<compile_context>
chip_gen: v7x
topology: tpu7x:2x2x1
jax: 0.10.0
libtpu: 0.0.40
codegen_flags: <defaults>
</compile_context>

<pallas_src>
import math
import functools

import jax
import jax.numpy as jnp
from jax.experimental import pallas as pl
from jax.experimental.pallas import tpu as pltpu


def mha_kernel(q_ref, k_ref, v_ref, mask_ref,
               wq_ref, bq_ref, wk_ref, bk_ref, wv_ref, bv_ref,
               wo_ref, bo_ref, out_ref, *, num_heads, d_k):
    h = num_heads
    scale = 1.0 / math.sqrt(d_k)

    # --- QKV projections: single lane-dense matmuls (bf16 in, f32 accumulate) ---
    q = jnp.dot(q_ref[...], wq_ref[...], preferred_element_type=jnp.float32) + bq_ref[...]
    k = jnp.dot(k_ref[...], wk_ref[...], preferred_element_type=jnp.float32) + bk_ref[...]
    v = jnp.dot(v_ref[...], wv_ref[...], preferred_element_type=jnp.float32) + bv_ref[...]
    q = (q * scale).astype(jnp.bfloat16)   # fold 1/sqrt(d_k) into Q, not the (S,S) scores
    k = k.astype(jnp.bfloat16)
    v = v.astype(jnp.bfloat16)

    # --- head split: static lane slices stacked to (h, rows, d_k) ---
    def to_heads(x):
        return jnp.stack([x[:, i * d_k:(i + 1) * d_k] for i in range(h)], axis=0)

    qh, kh, vh = to_heads(q), to_heads(k), to_heads(v)

    # --- scores for all heads at once: contract last dims (no explicit K transpose) ---
    scores = jnp.einsum('hqd,hkd->hqk', qh, kh, preferred_element_type=jnp.float32)

    # --- masked_fill(mask == 0, -1e9): exact PyTorch semantics (incl. fully-masked rows) ---
    scores = jnp.where(mask_ref[...][None, :, :] == 0,
                       jnp.float32(-1000000000.0), scores)

    # --- numerically-stable softmax over keys (f32; reciprocal on the EUP slot) ---
    m = jnp.max(scores, axis=-1, keepdims=True)
    e = jnp.exp(scores - m)
    denom = jnp.sum(e, axis=-1, keepdims=True)
    p = (e * pl.reciprocal(denom, approx=True)).astype(jnp.bfloat16)

    # --- per-head context, heads merged with a lane-level concat ---
    ctx = jnp.einsum('hqk,hkd->hqd', p, vh, preferred_element_type=jnp.float32)
    ctx = jnp.concatenate([ctx[i] for i in range(h)], axis=-1).astype(jnp.bfloat16)

    # --- output projection: one matmul, lane-dense (padded) output ---
    out = jnp.dot(ctx, wo_ref[...], preferred_element_type=jnp.float32) + bo_ref[...]
    out_ref[...] = out.astype(out_ref.dtype)


def _vmem_limit_bytes():
    # Re-derive the scoped-VMEM budget per generation (v7x: 64 MiB/TC, others: 128 MiB).
    try:
        cap = pltpu.get_tpu_info().vmem_capacity_bytes
        return max(32 * 1024 * 1024, min(int(cap * 3 // 4), 96 * 1024 * 1024))
    except Exception:
        return 48 * 1024 * 1024


def multi_headed_attention(q, k, v, mask, params, *, num_heads, block_q=256):
    """Pallas forward.  q/k/v: (S, d_model) f32, mask: (S, S) i32.  Returns (1, S, d_model)."""
    S, d_model = q.shape
    Sk = k.shape[0]
    assert d_model % num_heads == 0
    d_k = d_model // num_heads

    # Lane-dense output: pad the output feature dim up to a multiple of 128.
    d_pad = ((d_model + 127) // 128) * 128

    # Query-row tiling with a padded tail (no full-S fallback for ragged S).
    tq = min(block_q, ((S + 7) // 8) * 8)
    S_pad = ((S + tq - 1) // tq) * tq
    grid = (pl.cdiv(S_pad, tq),)

    if S_pad != S:
        q = jnp.pad(q, ((0, S_pad - S), (0, 0)))
        mask = jnp.pad(mask, ((0, S_pad - S), (0, 0)))  # padded rows fully masked; sliced off

    # bf16 matmul operands (f32 accumulation in-kernel); biases stay f32.
    to_bf16 = lambda x: x.astype(jnp.bfloat16)
    qb, kb, vb = to_bf16(q), to_bf16(k), to_bf16(v)
    wq, wk, wv = to_bf16(params["wq"]), to_bf16(params["wk"]), to_bf16(params["wv"])
    bq, bk, bv = params["bq"], params["bk"], params["bv"]

    wo, bo = params["wo"], params["bo"]
    if d_pad != d_model:
        wo = jnp.pad(wo, ((0, 0), (0, d_pad - d_model)))
        bo = jnp.pad(bo, ((0, 0), (0, d_pad - d_model)))
    wo = to_bf16(wo)

    kernel = functools.partial(mha_kernel, num_heads=num_heads, d_k=d_k)

    # TODO(synk): pipeline_mode=pl.Buffered(1) on the constant-index-map blocks (K/V/weights)
    #             once single-buffering of resident inputs is needed for v7x VMEM headroom.
    in_specs = [
        pl.BlockSpec((tq, d_model), lambda i: (i, 0)),        # q tile
        pl.BlockSpec((Sk, d_model), lambda i: (0, 0)),        # k (resident)
        pl.BlockSpec((Sk, d_model), lambda i: (0, 0)),        # v (resident)
        pl.BlockSpec((tq, Sk), lambda i: (i, 0)),             # int32 mask tile
        pl.BlockSpec((d_model, d_model), lambda i: (0, 0)),   # wq
        pl.BlockSpec((1, d_model), lambda i: (0, 0)),         # bq
        pl.BlockSpec((d_model, d_model), lambda i: (0, 0)),   # wk
        pl.BlockSpec((1, d_model), lambda i: (0, 0)),         # bk
        pl.BlockSpec((d_model, d_model), lambda i: (0, 0)),   # wv
        pl.BlockSpec((1, d_model), lambda i: (0, 0)),         # bv
        pl.BlockSpec((d_model, d_pad), lambda i: (0, 0)),     # wo (lane-padded)
        pl.BlockSpec((1, d_pad), lambda i: (0, 0)),           # bo (lane-padded)
    ]
    out_specs = pl.BlockSpec((tq, d_pad), lambda i: (i, 0))

    out = pl.pallas_call(
        kernel,
        out_shape=jax.ShapeDtypeStruct((S_pad, d_pad), jnp.float32),
        grid=grid,
        in_specs=in_specs,
        out_specs=out_specs,
        compiler_params=pltpu.CompilerParams(
            dimension_semantics=("parallel",),
            vmem_limit_bytes=_vmem_limit_bytes(),
        ),
    )(qb, kb, vb, mask, wq, bq, wk, bk, wv, bv, wo, bo)

    out = out[:S, :d_model]
    # PyTorch forward returns (nbatches=1, S, d_model)
    return out[None, :, :]


def reference_forward(q, k, v, mask, params, *, num_heads):
    """Pure-JAX reference reproducing the PyTorch module (eval mode)."""
    S, d_model = q.shape
    d_k = d_model // num_heads

    def lin(x, w, b):
        return x @ w + b  # w stored (in, out)

    def split_heads(x):  # (S, D) -> (1, h, S, d_k)
        return x.reshape(1, S, num_heads, d_k).transpose(0, 2, 1, 3)

    Q = split_heads(lin(q, params["wq"], params["bq"]))
    K = split_heads(lin(k, params["wk"], params["bk"]))
    V = split_heads(lin(v, params["wv"], params["bv"]))

    scores = jnp.einsum("bhqd,bhkd->bhqk", Q, K) / math.sqrt(d_k)
    scores = jnp.where(mask[None, None, :, :] == 0, -1000000000.0, scores)
    p = jax.nn.softmax(scores, axis=-1)
    ctx = jnp.einsum("bhqk,bhkd->bhqd", p, V)
    ctx = ctx.transpose(0, 2, 1, 3).reshape(1, S, d_model)
    return ctx @ params["wo"] + params["bo"]


def init_params(key, d_model):
    """Deterministic parameter init (shapes from nn.Linear(d_model, d_model) x4)."""
    ks = jax.random.split(key, 8)
    bound = 1.0 / math.sqrt(d_model)

    def u(k, shape):
        return jax.random.uniform(k, shape, jnp.float32, -bound, bound)

    return {
        "wq": u(ks[0], (d_model, d_model)), "bq": u(ks[1], (1, d_model)),
        "wk": u(ks[2], (d_model, d_model)), "bk": u(ks[3], (1, d_model)),
        "wv": u(ks[4], (d_model, d_model)), "bv": u(ks[5], (1, d_model)),
        "wo": u(ks[6], (d_model, d_model)), "bo": u(ks[7], (1, d_model)),
    }


if __name__ == "__main__":
    S = 8          # sequence length
    d_model = 32   # hidden size
    num_heads = 4  # h  (d_k = 8)

    root = jax.random.PRNGKey(0)
    k_q, k_k, k_v, k_p = jax.random.split(root, 4)

    q = jax.random.normal(k_q, (S, d_model), jnp.float32)
    k = jax.random.normal(k_k, (S, d_model), jnp.float32)
    v = jax.random.normal(k_v, (S, d_model), jnp.float32)
    # causal mask (exercises the masked_fill path)
    mask = jnp.tril(jnp.ones((S, S), jnp.int32))

    params = init_params(k_p, d_model)

    out = multi_headed_attention(q, k, v, mask, params, num_heads=num_heads)
    out = jax.block_until_ready(out)

    ref = reference_forward(q, k, v, mask, params, num_heads=num_heads)
    assert out.shape == (1, S, d_model)
    # bf16 matmul operands (f32 accumulation) + approx reciprocal -> 2e-2 tolerance
    assert jnp.allclose(out, ref, atol=2e-2, rtol=2e-2), "mismatch vs JAX reference"

    print("KERNEL_OK")
</pallas_src>

<mosaic_0001>
module attributes {stable_mosaic.version = 11 : i64} {
  func.func @mha_kernel(%arg0: i32, %arg1: memref<8x32xbf16, #tpu.memory_space<vmem>>, %arg2: memref<8x32xbf16, #tpu.memory_space<vmem>>, %arg3: memref<8x32xbf16, #tpu.memory_space<vmem>>, %arg4: memref<8x8xi32, #tpu.memory_space<vmem>>, %arg5: memref<32x32xbf16, #tpu.memory_space<vmem>>, %arg6: memref<1x32xf32, #tpu.memory_space<vmem>>, %arg7: memref<32x32xbf16, #tpu.memory_space<vmem>>, %arg8: memref<1x32xf32, #tpu.memory_space<vmem>>, %arg9: memref<32x32xbf16, #tpu.memory_space<vmem>>, %arg10: memref<1x32xf32, #tpu.memory_space<vmem>>, %arg11: memref<32x128xbf16, #tpu.memory_space<vmem>>, %arg12: memref<1x128xf32, #tpu.memory_space<vmem>>, %arg13: memref<8x128xf32, #tpu.memory_space<vmem>>) attributes {dimension_semantics = [#tpu.dimension_semantics<parallel>], iteration_bounds = array<i64: 1>, scalar_prefetch = 0 : i64, scratch_operands = 0 : i64, tpu.core_type = #tpu.core_type<tc>, window_params = [{transform_indices = @transform_0, window_bounds = array<i64: 8, 32>}, {pipeline_mode = #tpu.pipeline_mode<synchronous>, transform_indices = @transform_1, window_bounds = array<i64: 8, 32>}, {pipeline_mode = #tpu.pipeline_mode<synchronous>, transform_indices = @transform_2, window_bounds = array<i64: 8, 32>}, {transform_indices = @transform_3, window_bounds = array<i64: 8, 8>}, {pipeline_mode = #tpu.pipeline_mode<synchronous>, transform_indices = @transform_4, window_bounds = array<i64: 32, 32>}, {pipeline_mode = #tpu.pipeline_mode<synchronous>, transform_indices = @transform_5, window_bounds = array<i64: 1, 32>}, {pipeline_mode = #tpu.pipeline_mode<synchronous>, transform_indices = @transform_6, window_bounds = array<i64: 32, 32>}, {pipeline_mode = #tpu.pipeline_mode<synchronous>, transform_indices = @transform_7, window_bounds = array<i64: 1, 32>}, {pipeline_mode = #tpu.pipeline_mode<synchronous>, transform_indices = @transform_8, window_bounds = array<i64: 32, 32>}, {pipeline_mode = #tpu.pipeline_mode<synchronous>, transform_indices = @transform_9, window_bounds = array<i64: 1, 32>}, {pipeline_mode = #tpu.pipeline_mode<synchronous>, transform_indices = @transform_10, window_bounds = array<i64: 32, 128>}, {pipeline_mode = #tpu.pipeline_mode<synchronous>, transform_indices = @transform_11, window_bounds = array<i64: 1, 128>}, {transform_indices = @transform_12, window_bounds = array<i64: 8, 128>}]} {
    %c0 = arith.constant 0 : index
    %c0_0 = arith.constant 0 : index
    %0 = vector.load %arg1[%c0, %c0_0] : memref<8x32xbf16, #tpu.memory_space<vmem>>, vector<8x32xbf16>
    %c0_1 = arith.constant 0 : index
    %c0_2 = arith.constant 0 : index
    %1 = vector.load %arg5[%c0_1, %c0_2] : memref<32x32xbf16, #tpu.memory_space<vmem>>, vector<32x32xbf16>
    %cst = arith.constant dense<0.000000e+00> : vector<8x32xf32>
    %2 = tpu.matmul %0, %1, %cst {dimension_numbers = #tpu.dot_dimension_numbers<[1], [0], [0], [1], [0, 0, 1, 1], [], []>} : vector<8x32xbf16>, vector<32x32xbf16>, vector<8x32xf32> -> vector<8x32xf32>
    %c0_3 = arith.constant 0 : index
    %c0_4 = arith.constant 0 : index
    %3 = vector.load %arg6[%c0_3, %c0_4] : memref<1x32xf32, #tpu.memory_space<vmem>>, vector<1x32xf32>
    %4 = vector.broadcast %3 : vector<1x32xf32> to vector<8x32xf32>
    %5 = arith.addf %2, %4 : vector<8x32xf32>
    %c0_5 = arith.constant 0 : index
    %c0_6 = arith.constant 0 : index
    %6 = vector.load %arg2[%c0_5, %c0_6] : memref<8x32xbf16, #tpu.memory_space<vmem>>, vector<8x32xbf16>
    %c0_7 = arith.constant 0 : index
    %c0_8 = arith.constant 0 : index
    %7 = vector.load %arg7[%c0_7, %c0_8] : memref<32x32xbf16, #tpu.memory_space<vmem>>, vector<32x32xbf16>
    %cst_9 = arith.constant dense<0.000000e+00> : vector<8x32xf32>
    %8 = tpu.matmul %6, %7, %cst_9 {dimension_numbers = #tpu.dot_dimension_numbers<[1], [0], [0], [1], [0, 0, 1, 1], [], []>} : vector<8x32xbf16>, vector<32x32xbf16>, vector<8x32xf32> -> vector<8x32xf32>
    %c0_10 = arith.constant 0 : index
    %c0_11 = arith.constant 0 : index
    %9 = vector.load %arg8[%c0_10, %c0_11] : memref<1x32xf32, #tpu.memory_space<vmem>>, vector<1x32xf32>
    %10 = vector.broadcast %9 : vector<1x32xf32> to vector<8x32xf32>
    %11 = arith.addf %8, %10 : vector<8x32xf32>
    %c0_12 = arith.constant 0 : index
    %c0_13 = arith.constant 0 : index
    %12 = vector.load %arg3[%c0_12, %c0_13] : memref<8x32xbf16, #tpu.memory_space<vmem>>, vector<8x32xbf16>
    %c0_14 = arith.constant 0 : index
    %c0_15 = arith.constant 0 : index
    %13 = vector.load %arg9[%c0_14, %c0_15] : memref<32x32xbf16, #tpu.memory_space<vmem>>, vector<32x32xbf16>
    %cst_16 = arith.constant dense<0.000000e+00> : vector<8x32xf32>
    %14 = tpu.matmul %12, %13, %cst_16 {dimension_numbers = #tpu.dot_dimension_numbers<[1], [0], [0], [1], [0, 0, 1, 1], [], []>} : vector<8x32xbf16>, vector<32x32xbf16>, vector<8x32xf32> -> vector<8x32xf32>
    %c0_17 = arith.constant 0 : index
    %c0_18 = arith.constant 0 : index
    %15 = vector.load %arg10[%c0_17, %c0_18] : memref<1x32xf32, #tpu.memory_space<vmem>>, vector<1x32xf32>
    %16 = vector.broadcast %15 : vector<1x32xf32> to vector<8x32xf32>
    %17 = arith.addf %14, %16 : vector<8x32xf32>
    %cst_19 = arith.constant 0.353553385 : f32
    %18 = vector.broadcast %cst_19 : f32 to vector<8x32xf32>
    %19 = arith.mulf %5, %18 : vector<8x32xf32>
    %20 = arith.truncf %19 : vector<8x32xf32> to vector<8x32xbf16>
    %21 = arith.truncf %11 : vector<8x32xf32> to vector<8x32xbf16>
    %22 = arith.truncf %17 : vector<8x32xf32> to vector<8x32xbf16>
    %23 = vector.extract_strided_slice %20 {offsets = [0, 0], sizes = [8, 8], strides = [1, 1]} : vector<8x32xbf16> to vector<8x8xbf16>
    %24 = vector.extract_strided_slice %20 {offsets = [0, 8], sizes = [8, 8], strides = [1, 1]} : vector<8x32xbf16> to vector<8x8xbf16>
    %25 = vector.extract_strided_slice %20 {offsets = [0, 16], sizes = [8, 8], strides = [1, 1]} : vector<8x32xbf16> to vector<8x8xbf16>
    %26 = vector.extract_strided_slice %20 {offsets = [0, 24], sizes = [8, 8], strides = [1, 1]} : vector<8x32xbf16> to vector<8x8xbf16>
    %27 = vector.shape_cast %23 : vector<8x8xbf16> to vector<1x8x8xbf16>
    %28 = vector.shape_cast %24 : vector<8x8xbf16> to vector<1x8x8xbf16>
    %29 = vector.shape_cast %25 : vector<8x8xbf16> to vector<1x8x8xbf16>
    %30 = vector.shape_cast %26 : vector<8x8xbf16> to vector<1x8x8xbf16>
    %31 = tpu.concatenate %27, %28, %29, %30 in 0 : vector<1x8x8xbf16>, vector<1x8x8xbf16>, vector<1x8x8xbf16>, vector<1x8x8xbf16> -> vector<4x8x8xbf16>
    %32 = vector.extract_strided_slice %21 {offsets = [0, 0], sizes = [8, 8], strides = [1, 1]} : vector<8x32xbf16> to vector<8x8xbf16>
    %33 = vector.extract_strided_slice %21 {offsets = [0, 8], sizes = [8, 8], strides = [1, 1]} : vector<8x32xbf16> to vector<8x8xbf16>
    %34 = vector.extract_strided_slice %21 {offsets = [0, 16], sizes = [8, 8], strides = [1, 1]} : vector<8x32xbf16> to vector<8x8xbf16>
    %35 = vector.extract_strided_slice %21 {offsets = [0, 24], sizes = [8, 8], strides = [1, 1]} : vector<8x32xbf16> to vector<8x8xbf16>
    %36 = vector.shape_cast %32 : vector<8x8xbf16> to vector<1x8x8xbf16>
    %37 = vector.shape_cast %33 : vector<8x8xbf16> to vector<1x8x8xbf16>
    %38 = vector.shape_cast %34 : vector<8x8xbf16> to vector<1x8x8xbf16>
    %39 = vector.shape_cast %35 : vector<8x8xbf16> to vector<1x8x8xbf16>
    %40 = tpu.concatenate %36, %37, %38, %39 in 0 : vector<1x8x8xbf16>, vector<1x8x8xbf16>, vector<1x8x8xbf16>, vector<1x8x8xbf16> -> vector<4x8x8xbf16>
    %41 = vector.extract_strided_slice %22 {offsets = [0, 0], sizes = [8, 8], strides = [1, 1]} : vector<8x32xbf16> to vector<8x8xbf16>
    %42 = vector.extract_strided_slice %22 {offsets = [0, 8], sizes = [8, 8], strides = [1, 1]} : vector<8x32xbf16> to vector<8x8xbf16>
    %43 = vector.extract_strided_slice %22 {offsets = [0, 16], sizes = [8, 8], strides = [1, 1]} : vector<8x32xbf16> to vector<8x8xbf16>
    %44 = vector.extract_strided_slice %22 {offsets = [0, 24], sizes = [8, 8], strides = [1, 1]} : vector<8x32xbf16> to vector<8x8xbf16>
    %45 = vector.shape_cast %41 : vector<8x8xbf16> to vector<1x8x8xbf16>
    %46 = vector.shape_cast %42 : vector<8x8xbf16> to vector<1x8x8xbf16>
    %47 = vector.shape_cast %43 : vector<8x8xbf16> to vector<1x8x8xbf16>
    %48 = vector.shape_cast %44 : vector<8x8xbf16> to vector<1x8x8xbf16>
    %49 = tpu.concatenate %45, %46, %47, %48 in 0 : vector<1x8x8xbf16>, vector<1x8x8xbf16>, vector<1x8x8xbf16>, vector<1x8x8xbf16> -> vector<4x8x8xbf16>
    "tpu.trace_start"() <{level = 10 : i32, message = "hqd,hkd->hqk"}> : () -> ()
    %cst_20 = arith.constant dense<0.000000e+00> : vector<4x8x8xf32>
    %50 = tpu.matmul %31, %40, %cst_20 {dimension_numbers = #tpu.dot_dimension_numbers<[2], [2], [1], [1], [0, 0, 0, 1, 1, 1], [0], [0]>} : vector<4x8x8xbf16>, vector<4x8x8xbf16>, vector<4x8x8xf32> -> vector<4x8x8xf32>
    "tpu.trace_stop"() : () -> ()
    %c0_21 = arith.constant 0 : index
    %c0_22 = arith.constant 0 : index
    %51 = vector.load %arg4[%c0_21, %c0_22] : memref<8x8xi32, #tpu.memory_space<vmem>>, vector<8x8xi32>
    %52 = vector.shape_cast %51 : vector<8x8xi32> to vector<1x8x8xi32>
    %c0_i32 = arith.constant 0 : i32
    %53 = vector.broadcast %c0_i32 : i32 to vector<1x8x8xi32>
    %54 = arith.cmpi eq, %52, %53 : vector<1x8x8xi32>
    %cst_23 = arith.constant -1.000000e+09 : f32
    %55 = vector.shape_cast %54 : vector<1x8x8xi1> to vector<1x8x8xi1>
    %56 = vector.broadcast %55 : vector<1x8x8xi1> to vector<4x8x8xi1>
    %57 = vector.broadcast %cst_23 : f32 to vector<4x8x8xf32>
    %58 = arith.select %56, %57, %50 : vector<4x8x8xi1>, vector<4x8x8xf32>
    %cst_24 = arith.constant dense<0xFF800000> : vector<4x8xf32>
    %59 = vector.multi_reduction <maximumf>, %58, %cst_24 [2] : vector<4x8x8xf32> to vector<4x8xf32>
    %60 = vector.shape_cast %59 : vector<4x8xf32> to vector<4x8x1xf32>
    %61 = vector.broadcast %60 : vector<4x8x1xf32> to vector<4x8x8xf32>
    %62 = arith.subf %58, %61 : vector<4x8x8xf32>
    %63 = math.exp %62 : vector<4x8x8xf32>
    %cst_25 = arith.constant dense<0.000000e+00> : vector<4x8xf32>
    %64 = vector.multi_reduction <add>, %63, %cst_25 [2] : vector<4x8x8xf32> to vector<4x8xf32>
    %65 = vector.shape_cast %64 : vector<4x8xf32> to vector<4x8x1xf32>
    %66 = tpu.reciprocal %65 {approx = true} : vector<4x8x1xf32> -> vector<4x8x1xf32>
    %67 = vector.broadcast %66 : vector<4x8x1xf32> to vector<4x8x8xf32>
    %68 = arith.mulf %63, %67 : vector<4x8x8xf32>
    %69 = arith.truncf %68 : vector<4x8x8xf32> to vector<4x8x8xbf16>
    "tpu.trace_start"() <{level = 10 : i32, message = "hqk,hkd->hqd"}> : () -> ()
    %cst_26 = arith.constant dense<0.000000e+00> : vector<4x8x8xf32>
    %70 = tpu.matmul %69, %49, %cst_26 {dimension_numbers = #tpu.dot_dimension_numbers<[2], [1], [1], [2], [0, 0, 0, 1, 1, 2], [0], [0]>} : vector<4x8x8xbf16>, vector<4x8x8xbf16>, vector<4x8x8xf32> -> vector<4x8x8xf32>
    "tpu.trace_stop"() : () -> ()
    %71 = vector.extract_strided_slice %70 {offsets = [0, 0, 0], sizes = [1, 8, 8], strides = [1, 1, 1]} : vector<4x8x8xf32> to vector<1x8x8xf32>
    %72 = vector.shape_cast %71 : vector<1x8x8xf32> to vector<8x8xf32>
    %73 = vector.extract_strided_slice %70 {offsets = [1, 0, 0], sizes = [1, 8, 8], strides = [1, 1, 1]} : vector<4x8x8xf32> to vector<1x8x8xf32>
    %74 = vector.shape_cast %73 : vector<1x8x8xf32> to vector<8x8xf32>
    %75 = vector.extract_strided_slice %70 {offsets = [2, 0, 0], sizes = [1, 8, 8], strides = [1, 1, 1]} : vector<4x8x8xf32> to vector<1x8x8xf32>
    %76 = vector.shape_cast %75 : vector<1x8x8xf32> to vector<8x8xf32>
    %77 = vector.extract_strided_slice %70 {offsets = [3, 0, 0], sizes = [1, 8, 8], strides = [1, 1, 1]} : vector<4x8x8xf32> to vector<1x8x8xf32>
    %78 = vector.shape_cast %77 : vector<1x8x8xf32> to vector<8x8xf32>
    %79 = tpu.concatenate %72, %74, %76, %78 in 1 : vector<8x8xf32>, vector<8x8xf32>, vector<8x8xf32>, vector<8x8xf32> -> vector<8x32xf32>
    %80 = arith.truncf %79 : vector<8x32xf32> to vector<8x32xbf16>
    %c0_27 = arith.constant 0 : index
    %c0_28 = arith.constant 0 : index
    %81 = vector.load %arg11[%c0_27, %c0_28] : memref<32x128xbf16, #tpu.memory_space<vmem>>, vector<32x128xbf16>
    %cst_29 = arith.constant dense<0.000000e+00> : vector<8x128xf32>
    %82 = tpu.matmul %80, %81, %cst_29 {dimension_numbers = #tpu.dot_dimension_numbers<[1], [0], [0], [1], [0, 0, 1, 1], [], []>} : vector<8x32xbf16>, vector<32x128xbf16>, vector<8x128xf32> -> vector<8x128xf32>
    %c0_30 = arith.constant 0 : index
    %c0_31 = arith.constant 0 : index
    %83 = vector.load %arg12[%c0_30, %c0_31] : memref<1x128xf32, #tpu.memory_space<vmem>>, vector<1x128xf32>
    %84 = vector.broadcast %83 : vector<1x128xf32> to vector<8x128xf32>
    %85 = arith.addf %82, %84 : vector<8x128xf32>
    %c0_32 = arith.constant 0 : index
    %c0_33 = arith.constant 0 : index
    %86 = vector.load %arg13[%c0_32, %c0_33] : memref<8x128xf32, #tpu.memory_space<vmem>>, vector<8x128xf32>
    tpu.vector_store %arg13[%c0_32, %c0_33], %85 {strides = array<i32>} : memref<8x128xf32, #tpu.memory_space<vmem>>, vector<8x128xf32>,
    return
  }
  func.func @transform_0(%arg0: i32) -> (i32, i32) {
    %c0_i32 = arith.constant 0 : i32
    %c0_i32_0 = arith.constant 0 : i32
    return %arg0, %c0_i32 : i32, i32
  }
  func.func @transform_1(%arg0: i32) -> (i32, i32) {
    %c0_i32 = arith.constant 0 : i32
    %c0_i32_0 = arith.constant 0 : i32
    %c0_i32_1 = arith.constant 0 : i32
    return %c0_i32, %c0_i32_0 : i32, i32
  }
  func.func @transform_2(%arg0: i32) -> (i32, i32) {
    %c0_i32 = arith.constant 0 : i32
    %c0_i32_0 = arith.constant 0 : i32
    %c0_i32_1 = arith.constant 0 : i32
    return %c0_i32, %c0_i32_0 : i32, i32
  }
  func.func @transform_3(%arg0: i32) -> (i32, i32) {
    %c0_i32 = arith.constant 0 : i32
    %c0_i32_0 = arith.constant 0 : i32
    return %arg0, %c0_i32 : i32, i32
  }
  func.func @transform_4(%arg0: i32) -> (i32, i32) {
    %c0_i32 = arith.constant 0 : i32
    %c0_i32_0 = arith.constant 0 : i32
    %c0_i32_1 = arith.constant 0 : i32
    return %c0_i32, %c0_i32_0 : i32, i32
  }
  func.func @transform_5(%arg0: i32) -> (i32, i32) {
    %c0_i32 = arith.constant 0 : i32
    %c0_i32_0 = arith.constant 0 : i32
    %c0_i32_1 = arith.constant 0 : i32
    return %c0_i32, %c0_i32_0 : i32, i32
  }
  func.func @transform_6(%arg0: i32) -> (i32, i32) {
    %c0_i32 = arith.constant 0 : i32
    %c0_i32_0 = arith.constant 0 : i32
    %c0_i32_1 = arith.constant 0 : i32
    return %c0_i32, %c0_i32_0 : i32, i32
  }
  func.func @transform_7(%arg0: i32) -> (i32, i32) {
    %c0_i32 = arith.constant 0 : i32
    %c0_i32_0 = arith.constant 0 : i32
    %c0_i32_1 = arith.constant 0 : i32
    return %c0_i32, %c0_i32_0 : i32, i32
  }
  func.func @transform_8(%arg0: i32) -> (i32, i32) {
    %c0_i32 = arith.constant 0 : i32
    %c0_i32_0 = arith.constant 0 : i32
    %c0_i32_1 = arith.constant 0 : i32
    return %c0_i32, %c0_i32_0 : i32, i32
  }
  func.func @transform_9(%arg0: i32) -> (i32, i32) {
    %c0_i32 = arith.constant 0 : i32
    %c0_i32_0 = arith.constant 0 : i32
    %c0_i32_1 = arith.constant 0 : i32
    return %c0_i32, %c0_i32_0 : i32, i32
  }
  func.func @transform_10(%arg0: i32) -> (i32, i32) {
    %c0_i32 = arith.constant 0 : i32
    %c0_i32_0 = arith.constant 0 : i32
    %c0_i32_1 = arith.constant 0 : i32
    return %c0_i32, %c0_i32_0 : i32, i32
  }
  func.func @transform_11(%arg0: i32) -> (i32, i32) {
    %c0_i32 = arith.constant 0 : i32
    %c0_i32_0 = arith.constant 0 : i32
    %c0_i32_1 = arith.constant 0 : i32
    return %c0_i32, %c0_i32_0 : i32, i32
  }
  func.func @transform_12(%arg0: i32) -> (i32, i32) {
    %c0_i32 = arith.constant 0 : i32
    %c0_i32_0 = arith.constant 0 : i32
    return %arg0, %c0_i32 : i32, i32
  }
}

</mosaic_0001>

<llo_original>
// kernel: tpu_custom_call.1
$region0: #{tpu_custom_call.1}
  #allocation0 [shape = 'u32[]', space=smem, size = 0x4, offset = 0x4, fixed_abs, tag = 'smem constant byte address 0x4 - core index']
  #allocation1 [shape = 'u32[144,128]{1,0:T(1,128)}', space=vmem, size = 0x12000, scoped, tag = 'internal scratch']
  %s0 = inlined_call_operand.hbm [shape: bf16[8,32], index: 0, kind: input, shape index: {}]
  %s1 = inlined_call_operand.hbm [shape: bf16[8,32], index: 1, kind: input, shape index: {}]
  %s2 = inlined_call_operand.hbm [shape: bf16[8,32], index: 2, kind: input, shape index: {}]
  %s3 = inlined_call_operand.hbm [shape: s32[8,8], index: 3, kind: input, shape index: {}]
  %s4 = inlined_call_operand.hbm [shape: bf16[32,32], index: 4, kind: input, shape index: {}]
  %s5 = inlined_call_operand.vmem [shape: f32[1,32], index: 5, kind: input, shape index: {}]
  %s6 = inlined_call_operand.vmem [shape: bf16[32,32], index: 6, kind: input, shape index: {}]
  %s7 = inlined_call_operand.vmem [shape: f32[1,32], index: 7, kind: input, shape index: {}]
  %s8 = inlined_call_operand.hbm [shape: bf16[32,32], index: 8, kind: input, shape index: {}]
  %s9 = inlined_call_operand.hbm [shape: f32[1,32], index: 9, kind: input, shape index: {}]
  %s10 = inlined_call_operand.vmem [shape: bf16[32,128], index: 10, kind: input, shape index: {}]
  %s11 = inlined_call_operand.vmem [shape: f32[1,128], index: 11, kind: input, shape index: {}]
  %s12 = inlined_call_operand.hbm [shape: f32[8,128], index: 12, kind: output, shape index: {}]
  %s13 = sld [smem:[#allocation0]]
  $region86: #{tpu_custom_call.1} parent=0
    _
  %s15 = ssub.s32 1, %s13
  %s16 = scalar_select 0, %s15, %s13
  $region1: #{tpu_custom_call.1} parent=0
    #allocation2 [shape = 'u8[2048]{0}', space=vmem, size = 0x800, scoped, tag = 'input window, operand 0, single buffered']
    #allocation3 [shape = 's32[1]{0}', space=sflag, size = 0x4, scoped, tag = 'scoped memory for tpu_custom_call.1']
    #allocation4 [shape = 's32[1]{0}', space=sflag, size = 0x4, scoped, tag = 'scoped memory for tpu_custom_call.1']
    #allocation5 [shape = 'u8[2048]{0}', space=vmem, size = 0x800, scoped, tag = 'input window, operand 1, single buffered']
    #allocation6 [shape = 's32[1]{0}', space=sflag, size = 0x4, scoped, tag = 'scoped memory for tpu_custom_call.1']
    #allocation7 [shape = 'u8[2048]{0}', space=vmem, size = 0x800, scoped, tag = 'input window, operand 2, single buffered']
    #allocation8 [shape = 'u8[4096]{0}', space=vmem, size = 0x1000, scoped, tag = 'input window, operand 3, single buffered']
    #allocation9 [shape = 's32[1]{0}', space=sflag, size = 0x4, scoped, tag = 'scoped memory for tpu_custom_call.1']
    #allocation10 [shape = 'u8[8192]{0}', space=vmem, size = 0x2000, scoped, tag = 'input window, operand 4, single buffered']
    #allocation11 [shape = 'u8[8192]{0}', space=vmem, size = 0x2000, scoped, tag = 'input window, operand 8, single buffered']
    #allocation12 [shape = 's32[1]{0}', space=sflag, size = 0x4, scoped, tag = 'scoped memory for tpu_custom_call.1']
    #allocation13 [shape = 'u8[512]{0}', space=vmem, size = 0x400, scoped, tag = 'input window, operand 9, single buffered']
    #allocation14 [shape = 'u8[4096]{0}', space=vmem, size = 0x1000, scoped, tag = 'output window, operand 0, single buffered']
    %17 = vsyncpa [#allocation3], 0
    %18 = vsyncpa [#allocation6], 0
    %19 = vsyncpa [#allocation9], 0
    %20 = vsyncpa [#allocation12], 0
    %21 = vsyncpa [#allocation4], 0
    // Predicated region
    $region2: #{tpu_custom_call.1} parent=1 // pred_check
      _
    $region3: #{tpu_custom_call.1} parent=1 // pred_check_branch
      %23 = sbr.rel (0) target = $region5
    $region4: #{tpu_custom_call.1} parent=1 // pred_region
      %s25 = ssub.s32 64, 64
      %26 = vsyncadd [#allocation3], %s25
      %s28 = sshll.u32 [#allocation2], 4
      %s29 = int_to_ptr.vmem [resolvable:$true] %s28
      %31 = dma.hbm_to_vmem [thread:$0]  %s0, 64, %s29, [#allocation3]
    $region5: #{tpu_custom_call.1} parent=1 // pred_fallthru
      _
    // Predicated region
    $region6: #{tpu_custom_call.1} parent=1 // pred_check
      _
    $region7: #{tpu_custom_call.1} parent=1 // pred_check_branch
      %33 = sbr.rel (0) target = $region9
    $region8: #{tpu_custom_call.1} parent=1 // pred_region
      %s35 = ssub.s32 64, 64
      %36 = vsyncadd [#allocation6], %s35
      %s38 = sshll.u32 [#allocation5], 4
      %s39 = int_to_ptr.vmem [resolvable:$true] %s38
      %41 = dma.hbm_to_vmem [thread:$0]  %s1, 64, %s39, [#allocation6]
    $region9: #{tpu_custom_call.1} parent=1 // pred_fallthru
      _
    // Predicated region
    $region10: #{tpu_custom_call.1} parent=1 // pred_check
      _
    $region11: #{tpu_custom_call.1} parent=1 // pred_check_branch
      %43 = sbr.rel (0) target = $region13
    $region12: #{tpu_custom_call.1} parent=1 // pred_region
      %s45 = ssub.s32 64, 64
      %46 = vsyncadd [#allocation6], %s45
      %s48 = sshll.u32 [#allocation7], 4
      %s49 = int_to_ptr.vmem [resolvable:$true] %s48
      %51 = dma.hbm_to_vmem [thread:$0]  %s2, 64, %s49, [#allocation6]
    $region13: #{tpu_custom_call.1} parent=1 // pred_fallthru
      _
    // Predicated region
    $region14: #{tpu_custom_call.1} parent=1 // pred_check
      _
    $region15: #{tpu_custom_call.1} parent=1 // pred_check_branch
      %53 = sbr.rel (0) target = $region17
    $region16: #{tpu_custom_call.1} parent=1 // pred_region
      %s55 = ssub.s32 128, 128
      %56 = vsyncadd [#allocation9], %s55
      %s58 = sshll.u32 [#allocation8], 4
      %s59 = int_to_ptr.vmem [resolvable:$true] %s58
      %61 = dma.hbm_to_vmem [thread:$0]  %s3, 128, %s59, [#allocation9]
    $region17: #{tpu_custom_call.1} parent=1 // pred_fallthru
      _
    // Predicated region
    $region18: #{tpu_custom_call.1} parent=1 // pred_check
      _
    $region19: #{tpu_custom_call.1} parent=1 // pred_check_branch
      %63 = sbr.rel (0) target = $region21
    $region20: #{tpu_custom_call.1} parent=1 // pred_region
      %s65 = ssub.s32 256, 256
      %66 = vsyncadd [#allocation9], %s65
      %s67 = sshll.u32 [#allocation10], 4
      %s68 = int_to_ptr.vmem [resolvable:$true] %s67
      %73 = dma.hbm_to_vmem [thread:$0]  %s4, 256, %s68, [#allocation9], 64, 64, 4
    $region21: #{tpu_custom_call.1} parent=1 // pred_fallthru
      _
    // Predicated region
    $region22: #{tpu_custom_call.1} parent=1 // pred_check
      _
    $region23: #{tpu_custom_call.1} parent=1 // pred_check_branch
      %75 = sbr.rel (0) target = $region25
    $region24: #{tpu_custom_call.1} parent=1 // pred_region
      _
    $region25: #{tpu_custom_call.1} parent=1 // pred_fallthru
      _
    // Predicated region
    $region26: #{tpu_custom_call.1} parent=1 // pred_check
      _
    $region27: #{tpu_custom_call.1} parent=1 // pred_check_branch
      %77 = sbr.rel (0) target = $region29
    $region28: #{tpu_custom_call.1} parent=1 // pred_region
      _
    $region29: #{tpu_custom_call.1} parent=1 // pred_fallthru
      _
    // Predicated region
    $region30: #{tpu_custom_call.1} parent=1 // pred_check
      _
    $region31: #{tpu_custom_call.1} parent=1 // pred_check_branch
      %79 = sbr.rel (0) target = $region33
    $region32: #{tpu_custom_call.1} parent=1 // pred_region
      _
    $region33: #{tpu_custom_call.1} parent=1 // pred_fallthru
      _
    // Predicated region
    $region34: #{tpu_custom_call.1} parent=1 // pred_check
      _
    $region35: #{tpu_custom_call.1} parent=1 // pred_check_branch
      %81 = sbr.rel (0) target = $region37
    $region36: #{tpu_custom_call.1} parent=1 // pred_region
      %s83 = ssub.s32 256, 256
      %84 = vsyncadd [#allocation12], %s83
      %s85 = sshll.u32 [#allocation11], 4
      %s86 = int_to_ptr.vmem [resolvable:$true] %s85
      %91 = dma.hbm_to_vmem [thread:$0]  %s8, 256, %s86, [#allocation12], 64, 64, 4
    $region37: #{tpu_custom_call.1} parent=1 // pred_fallthru
      _
    // Predicated region
    $region38: #{tpu_custom_call.1} parent=1 // pred_check
      _
    $region39: #{tpu_custom_call.1} parent=1 // pred_check_branch
      %93 = sbr.rel (0) target = $region41
    $region40: #{tpu_custom_call.1} parent=1 // pred_region
      %s95 = ssub.s32 16, 16
      %96 = vsyncadd [#allocation12], %s95
      %s98 = sshll.u32 [#allocation13], 4
      %s99 = int_to_ptr.vmem [resolvable:$true] %s98
      %101 = dma.hbm_to_vmem [thread:$0]  %s9, 16, %s99, [#allocation12]
    $region41: #{tpu_custom_call.1} parent=1 // pred_fallthru
      _
    // Predicated region
    $region42: #{tpu_custom_call.1} parent=1 // pred_check
      _
    $region43: #{tpu_custom_call.1} parent=1 // pred_check_branch
      %103 = sbr.rel (0) target = $region45
    $region44: #{tpu_custom_call.1} parent=1 // pred_region
      _
    $region45: #{tpu_custom_call.1} parent=1 // pred_fallthru
      _
    // Predicated region
    $region46: #{tpu_custom_call.1} parent=1 // pred_check
      _
    $region47: #{tpu_custom_call.1} parent=1 // pred_check_branch
      %105 = sbr.rel (0) target = $region49
    $region48: #{tpu_custom_call.1} parent=1 // pred_region
      _
    $region49: #{tpu_custom_call.1} parent=1 // pred_fallthru
      _
    // Predicated region
    $region50: #{tpu_custom_call.1} parent=1 // pred_check
      _
    $region51: #{tpu_custom_call.1} parent=1 // pred_check_branch
      %107 = sbr.rel (0) target = $region53
    $region52: #{tpu_custom_call.1} parent=1 // pred_region
      %108 = dma.done [#allocation3], 64
    $region53: #{tpu_custom_call.1} parent=1 // pred_fallthru
      _
    // Predicated region
    $region54: #{tpu_custom_call.1} parent=1 // pred_check
      _
    $region55: #{tpu_custom_call.1} parent=1 // pred_check_branch
      %110 = sbr.rel (0) target = $region57
    $region56: #{tpu_custom_call.1} parent=1 // pred_region
      %111 = dma.done [#allocation6], 64
    $region57: #{tpu_custom_call.1} parent=1 // pred_fallthru
      _
    // Predicated region
    $region58: #{tpu_custom_call.1} parent=1 // pred_check
      _
    $region59: #{tpu_custom_call.1} parent=1 // pred_check_branch
      %113 = sbr.rel (0) target = $region61
    $region60: #{tpu_custom_call.1} parent=1 // pred_region
      %114 = dma.done [#allocation6], 64
    $region61: #{tpu_custom_call.1} parent=1 // pred_fallthru
      _
    // Predicated region
    $region62: #{tpu_custom_call.1} parent=1 // pred_check
      _
    $region63: #{tpu_custom_call.1} parent=1 // pred_check_branch
      %116 = sbr.rel (0) target = $region65
    $region64: #{tpu_custom_call.1} parent=1 // pred_region
      %117 = dma.done [#allocation9], 128
    $region65: #{tpu_custom_call.1} parent=1 // pred_fallthru
      _
    // Predicated region
    $region66: #{tpu_custom_call.1} parent=1 // pred_check
      _
    $region67: #{tpu_custom_call.1} parent=1 // pred_check_branch
      %119 = sbr.rel (0) target = $region69
    $region68: #{tpu_custom_call.1} parent=1 // pred_region
      %120 = dma.done [#allocation9], 256
    $region69: #{tpu_custom_call.1} parent=1 // pred_fallthru
      _
    // Predicated region
    $region70: #{tpu_custom_call.1} parent=1 // pred_check
      _
    $region71: #{tpu_custom_call.1} parent=1 // pred_check_branch
      %122 = sbr.rel (0) target = $region73
    $region72: #{tpu_custom_call.1} parent=1 // pred_region
      %123 = dma.done [#allocation12], 256
    $region73: #{tpu_custom_call.1} parent=1 // pred_fallthru
      _
    // Predicated region
    $region74: #{tpu_custom_call.1} parent=1 // pred_check
      _
    $region75: #{tpu_custom_call.1} parent=1 // pred_check_branch
      %125 = sbr.rel (0) target = $region77
    $region76: #{tpu_custom_call.1} parent=1 // pred_region
      %126 = dma.done [#allocation12], 16
    $region77: #{tpu_custom_call.1} parent=1 // pred_fallthru
      _
    %v128 = vld [vmem:[#allocation2] sm:$0xf]
    %v129 = vld [vmem:[#allocation10] sm:$0xf]
    %v130 = vld [vmem:[#allocation10 + $0x4] sm:$0xf]
    %v131 = vld [vmem:[#allocation10 + $0x8] sm:$0xf]
    %v132 = vld [vmem:[#allocation10 + $0xc] sm:$0xf]
    %v133 = vld [vmem:[%s5] sm:$0x1]
    %v135 = vlaneseq
    %v136 = vshrl.u32 %v135, 7
    %v137 = vsub.s32 0, %v136
    %v138 = vrot.slane %v133, %v137
    %v144 = vunpack.c.l.b16 %v129
    %v145 = vunpack.c.l.b16 %v130
    %v146 = vunpack.c.l.b16 %v131
    %v147 = vunpack.c.l.b16 %v132
    %v148 = vpack.c.b16 %v145, %v144
    %v149 = vpack.c.b16 %v147, %v146
    %vm152 = vcmask 261120
    %v154 = vsel %vm152, %v128, 0
    %156 = vmatprep.subr.bf16.mxu0 0
    %157 = vmatpush1.bf16.msra.mxu0 %v148
    %158 = vmatprep.subr.bf16.mxu0 0
    %159 = vmatpush1.bf16.msra.mxu0 %v149
    %160 = vmatprep.subr.bf16.mxu0 0
    %161 = vmatpush1.bf16.msra.mxu0 0
    %162 = vmatprep.subr.bf16.mxu0 0
    %163 = vmatpush1.bf16.msra.mxu0 0
    %164 = vmatprep.subr.bf16.mxu0 0
    %165 = vmatpush1.bf16.msra.mxu0 0
    %166 = vmatprep.subr.bf16.mxu0 0
    %167 = vmatpush1.bf16.msra.mxu0 0
    %168 = vmatprep.subr.bf16.mxu0 0
    %169 = vmatpush1.bf16.msra.mxu0 0
    %170 = vmatprep.subr.bf16.mxu0 0
    %171 = vmatpush1.bf16.msra.mxu0 0
    %172 = vmatprep.subr.bf16.mxu0 0
    %173 = vmatpush1.bf16.msra.mxu0 0
    %174 = vmatprep.subr.bf16.mxu0 0
    %175 = vmatpush1.bf16.msra.mxu0 0
    %176 = vmatprep.subr.bf16.mxu0 0
    %177 = vmatpush1.bf16.msra.mxu0 0
    %178 = vmatprep.subr.bf16.mxu0 0
    %179 = vmatpush1.bf16.msra.mxu0 0
    %180 = vmatprep.subr.bf16.mxu0 0
    %181 = vmatpush1.bf16.msra.mxu0 0
    %182 = vmatprep.subr.bf16.mxu0 0
    %183 = vmatpush1.bf16.msra.mxu0 0
    %184 = vmatprep.subr.bf16.mxu0 0
    %185 = vmatpush1.bf16.msra.mxu0 0
    %186 = vmatprep.subr.bf16.mxu0 0
    %187 = vmatpush1.bf16.msra.mxu0 0
    %188 = vmatprep.mubr.bf16.mxu0 0
    %189 = vmatmul.mubr.bf16.gmra.mrb[0].mxu0 %v154
    %v190 = vpop.f32.mrb[0].mxu0
    %v191 = vadd.f32 %v138, %v190
    %v192 = vpop.f32.mrb[0].mxu0
    %v193 = vpop.f32.mrb[0].mxu0
    %v194 = vpop.f32.mrb[0].mxu0
    %195 = vdwg.mxu0
    %v196 = vld [vmem:[#allocation5] sm:$0xf]
    %v197 = vld [vmem:[%s6] sm:$0xf]
    %v198 = vld [vmem:[%s6 + $0x4] sm:$0xf]
    %v199 = vld [vmem:[%s6 + $0x8] sm:$0xf]
    %v200 = vld [vmem:[%s6 + $0xc] sm:$0xf]
    %v201 = vld [vmem:[%s7] sm:$0x1]
    %v203 = vlaneseq
    %v204 = vshrl.u32 %v203, 7
    %v205 = vsub.s32 0, %v204
    %v206 = vrot.slane %v201, %v205
    %v212 = vunpack.c.l.b16 %v197
    %v213 = vunpack.c.l.b16 %v198
    %v214 = vunpack.c.l.b16 %v199
    %v215 = vunpack.c.l.b16 %v200
    %v216 = vpack.c.b16 %v213, %v212
    %v217 = vpack.c.b16 %v215, %v214
    %v221 = vsel %vm152, %v196, 0
    %223 = vmatprep.subr.bf16.mxu0 0
    %224 = vmatpush1.bf16.msra.mxu0 %v216
    %225 = vmatprep.subr.bf16.mxu0 0
    %226 = vmatpush1.bf16.msra.mxu0 %v217
    %227 = vmatprep.subr.bf16.mxu0 0
    %228 = vmatpush1.bf16.msra.mxu0 0
    %229 = vmatprep.subr.bf16.mxu0 0
    %230 = vmatpush1.bf16.msra.mxu0 0
    %231 = vmatprep.subr.bf16.mxu0 0
    %232 = vmatpush1.bf16.msra.mxu0 0
    %233 = vmatprep.subr.bf16.mxu0 0
    %234 = vmatpush1.bf16.msra.mxu0 0
    %235 = vmatprep.subr.bf16.mxu0 0
    %236 = vmatpush1.bf16.msra.mxu0 0
    %237 = vmatprep.subr.bf16.mxu0 0
    %238 = vmatpush1.bf16.msra.mxu0 0
    %239 = vmatprep.subr.bf16.mxu0 0
    %240 = vmatpush1.bf16.msra.mxu0 0
    %241 = vmatprep.subr.bf16.mxu0 0
    %242 = vmatpush1.bf16.msra.mxu0 0
    %243 = vmatprep.subr.bf16.mxu0 0
    %244 = vmatpush1.bf16.msra.mxu0 0
    %245 = vmatprep.subr.bf16.mxu0 0
    %246 = vmatpush1.bf16.msra.mxu0 0
    %247 = vmatprep.subr.bf16.mxu0 0
    %248 = vmatpush1.bf16.msra.mxu0 0
    %249 = vmatprep.subr.bf16.mxu0 0
    %250 = vmatpush1.bf16.msra.mxu0 0
    %251 = vmatprep.subr.bf16.mxu0 0
    %252 = vmatpush1.bf16.msra.mxu0 0
    %253 = vmatprep.subr.bf16.mxu0 0
    %254 = vmatpush1.bf16.msra.mxu0 0
    %255 = vmatprep.mubr.bf16.mxu0 0
    %256 = vmatmul.mubr.bf16.gmra.mrb[0].mxu0 %v221
    %v257 = vpop.f32.mrb[0].mxu0
    %v258 = vadd.f32 %v206, %v257
    %v259 = vpop.f32.mrb[0].mxu0
    %v260 = vpop.f32.mrb[0].mxu0
    %v261 = vpop.f32.mrb[0].mxu0
    %262 = vdwg.mxu0
    %v263 = vld [vmem:[#allocation7] sm:$0xf]
    %v264 = vld [vmem:[#allocation11] sm:$0xf]
    %v265 = vld [vmem:[#allocation11 + $0x4] sm:$0xf]
    %v266 = vld [vmem:[#allocation11 + $0x8] sm:$0xf]
    %v267 = vld [vmem:[#allocation11 + $0xc] sm:$0xf]
    %v268 = vld [vmem:[#allocation13] sm:$0x1]
    %v270 = vlaneseq
    %v271 = vshrl.u32 %v270, 7
    %v272 = vsub.s32 0, %v271
    %v273 = vrot.slane %v268, %v272
    %v279 = vunpack.c.l.b16 %v264
    %v280 = vunpack.c.l.b16 %v265
    %v281 = vunpack.c.l.b16 %v266
    %v282 = vunpack.c.l.b16 %v267
    %v283 = vpack.c.b16 %v280, %v279
    %v284 = vpack.c.b16 %v282, %v281
    %v288 = vsel %vm152, %v263, 0
    %290 = vmatprep.subr.bf16.mxu0 0
    %291 = vmatpush1.bf16.msra.mxu0 %v283
    %292 = vmatprep.subr.bf16.mxu0 0
    %293 = vmatpush1.bf16.msra.mxu0 %v284
    %294 = vmatprep.subr.bf16.mxu0 0
    %295 = vmatpush1.bf16.msra.mxu0 0
    %296 = vmatprep.subr.bf16.mxu0 0
    %297 = vmatpush1.bf16.msra.mxu0 0
    %298 = vmatprep.subr.bf16.mxu0 0
    %299 = vmatpush1.bf16.msra.mxu0 0
    %300 = vmatprep.subr.bf16.mxu0 0
    %301 = vmatpush1.bf16.msra.mxu0 0
    %302 = vmatprep.subr.bf16.mxu0 0
    %303 = vmatpush1.bf16.msra.mxu0 0
    %304 = vmatprep.subr.bf16.mxu0 0
    %305 = vmatpush1.bf16.msra.mxu0 0
    %306 = vmatprep.subr.bf16.mxu0 0
    %307 = vmatpush1.bf16.msra.mxu0 0
    %308 = vmatprep.subr.bf16.mxu0 0
    %309 = vmatpush1.bf16.msra.mxu0 0
    %310 = vmatprep.subr.bf16.mxu0 0
    %311 = vmatpush1.bf16.msra.mxu0 0
    %312 = vmatprep.subr.bf16.mxu0 0
    %313 = vmatpush1.bf16.msra.mxu0 0
    %314 = vmatprep.subr.bf16.mxu0 0
    %315 = vmatpush1.bf16.msra.mxu0 0
    %316 = vmatprep.subr.bf16.mxu0 0
    %317 = vmatpush1.bf16.msra.mxu0 0
    %318 = vmatprep.subr.bf16.mxu0 0
    %319 = vmatpush1.bf16.msra.mxu0 0
    %320 = vmatprep.subr.bf16.mxu0 0
    %321 = vmatpush1.bf16.msra.mxu0 0
    %322 = vmatprep.mubr.bf16.mxu0 0
    %323 = vmatmul.mubr.bf16.gmra.mrb[0].mxu0 %v288
    %v324 = vpop.f32.mrb[0].mxu0
    %v325 = vadd.f32 %v273, %v324
    %v326 = vpop.f32.mrb[0].mxu0
    %v327 = vpop.f32.mrb[0].mxu0
    %v328 = vpop.f32.mrb[0].mxu0
    %329 = vdwg.mxu0
    %v330 = vmul.f32 %v191, 0.35355338
    %v331 = vpack.c.bf16 %v330, %v330
    %v332 = vpack.c.bf16 %v258, %v258
    %v333 = vpack.c.bf16 %v325, %v325
    %335 = vrot.lane.b32.xlu0 %v331, 120
    %v336 = vpop.permute.xlu0 %335
    %337 = vrot.lane.b32.xlu0 %v331, 112
    %v338 = vpop.permute.xlu0 %337
    %339 = vrot.lane.b32.xlu0 %v331, 104
    %v340 = vpop.permute.xlu0 %339
    %342 = vrot.lane.b32.xlu0 %v332, 120
    %v343 = vpop.permute.xlu0 %342
    %344 = vrot.lane.b32.xlu0 %v332, 112
    %v345 = vpop.permute.xlu0 %344
    %346 = vrot.lane.b32.xlu0 %v332, 104
    %v347 = vpop.permute.xlu0 %346
    %349 = vrot.lane.b32.xlu0 %v333, 120
    %v350 = vpop.permute.xlu0 %349
    %351 = vrot.lane.b32.xlu0 %v333, 112
    %v352 = vpop.permute.xlu0 %351
    %353 = vrot.lane.b32.xlu0 %v333, 104
    %v354 = vpop.permute.xlu0 %353
    %vm355 = vcmask 64512
    %v357 = vsel %vm355, %v331, 0
    %v360 = vsel %vm355, %v332, 0
    %362 = vmatprep.subr.bf16.mxu0 0
    %363 = vmatpush1.bf16.xpose.msra.mxu0 %v360
    %364 = vmatprep.subr.bf16.mxu0 0
    %365 = vmatpush1.bf16.xpose.msra.mxu0 0
    %366 = vmatprep.subr.bf16.mxu0 0
    %367 = vmatpush1.bf16.xpose.msra.mxu0 0
    %368 = vmatprep.subr.bf16.mxu0 0
    %369 = vmatpush1.bf16.xpose.msra.mxu0 0
    %370 = vmatprep.subr.bf16.mxu0 0
    %371 = vmatpush1.bf16.xpose.msra.mxu0 0
    %372 = vmatprep.subr.bf16.mxu0 0
    %373 = vmatpush1.bf16.xpose.msra.mxu0 0
    %374 = vmatprep.subr.bf16.mxu0 0
    %375 = vmatpush1.bf16.xpose.msra.mxu0 0
    %376 = vmatprep.subr.bf16.mxu0 0
    %377 = vmatpush1.bf16.xpose.msra.mxu0 0
    %378 = vmatprep.subr.bf16.mxu0 0
    %379 = vmatpush1.bf16.xpose.msra.mxu0 0
    %380 = vmatprep.subr.bf16.mxu0 0
    %381 = vmatpush1.bf16.xpose.msra.mxu0 0
    %382 = vmatprep.subr.bf16.mxu0 0
    %383 = vmatpush1.bf16.xpose.msra.mxu0 0
    %384 = vmatprep.subr.bf16.mxu0 0
    %385 = vmatpush1.bf16.xpose.msra.mxu0 0
    %386 = vmatprep.subr.bf16.mxu0 0
    %387 = vmatpush1.bf16.xpose.msra.mxu0 0
    %388 = vmatprep.subr.bf16.mxu0 0
    %389 = vmatpush1.bf16.xpose.msra.mxu0 0
    %390 = vmatprep.subr.bf16.mxu0 0
    %391 = vmatpush1.bf16.xpose.msra.mxu0 0
    %392 = vmatprep.subr.bf16.mxu0 0
    %393 = vmatpush1.bf16.xpose.msra.mxu0 0
    %394 = vmatprep.mubr.bf16.mxu0 0
    %395 = vmatmul.mubr.bf16.gmra.mrb[0].mxu0 %v357
    %v396 = vpop.f32.mrb[0].mxu0
    %v397 = vadd.f32 0.0, %v396
    %v398 = vpop.f32.mrb[0].mxu0
    %v399 = vpop.f32.mrb[0].mxu0
    %v400 = vpop.f32.mrb[0].mxu0
    %401 = vdwg.mxu0
    %v403 = vsel %vm355, %v336, 0
    %v406 = vsel %vm355, %v343, 0
    %408 = vmatprep.subr.bf16.mxu0 0
    %409 = vmatpush1.bf16.xpose.msra.mxu0 %v406
    %410 = vmatprep.subr.bf16.mxu0 0
    %411 = vmatpush1.bf16.xpose.msra.mxu0 0
    %412 = vmatprep.subr.bf16.mxu0 0
    %413 = vmatpush1.bf16.xpose.msra.mxu0 0
    %414 = vmatprep.subr.bf16.mxu0 0
    %415 = vmatpush1.bf16.xpose.msra.mxu0 0
    %416 = vmatprep.subr.bf16.mxu0 0
    %417 = vmatpush1.bf16.xpose.msra.mxu0 0
    %418 = vmatprep.subr.bf16.mxu0 0
    %419 = vmatpush1.bf16.xpose.msra.mxu0 0
    %420 = vmatprep.subr.bf16.mxu0 0
    %421 = vmatpush1.bf16.xpose.msra.mxu0 0
    %422 = vmatprep.subr.bf16.mxu0 0
    %423 = vmatpush1.bf16.xpose.msra.mxu0 0
    %424 = vmatprep.subr.bf16.mxu0 0
    %425 = vmatpush1.bf16.xpose.msra.mxu0 0
    %426 = vmatprep.subr.bf16.mxu0 0
    %427 = vmatpush1.bf16.xpose.msra.mxu0 0
    %428 = vmatprep.subr.bf16.mxu0 0
    %429 = vmatpush1.bf16.xpose.msra.mxu0 0
    %430 = vmatprep.subr.bf16.mxu0 0
    %431 = vmatpush1.bf16.xpose.msra.mxu0 0
    %432 = vmatprep.subr.bf16.mxu0 0
    %433 = vmatpush1.bf16.xpose.msra.mxu0 0
    %434 = vmatprep.subr.bf16.mxu0 0
    %435 = vmatpush1.bf16.xpose.msra.mxu0 0
    %436 = vmatprep.subr.bf16.mxu0 0
    %437 = vmatpush1.bf16.xpose.msra.mxu0 0
    %438 = vmatprep.subr.bf16.mxu0 0
    %439 = vmatpush1.bf16.xpose.msra.mxu0 0
    %440 = vmatprep.mubr.bf16.mxu0 0
    %441 = vmatmul.mubr.bf16.gmra.mrb[0].mxu0 %v403
    %v442 = vpop.f32.mrb[0].mxu0
    %v443 = vadd.f32 0.0, %v442
    %v444 = vpop.f32.mrb[0].mxu0
    %v445 = vpop.f32.mrb[0].mxu0
    %v446 = vpop.f32.mrb[0].mxu0
    %447 = vdwg.mxu0
    %v449 = vsel %vm355, %v338, 0
    %v452 = vsel %vm355, %v345, 0
    %454 = vmatprep.subr.bf16.mxu0 0
    %455 = vmatpush1.bf16.xpose.msra.mxu0 %v452
    %456 = vmatprep.subr.bf16.mxu0 0
    %457 = vmatpush1.bf16.xpose.msra.mxu0 0
    %458 = vmatprep.subr.bf16.mxu0 0
    %459 = vmatpush1.bf16.xpose.msra.mxu0 0
    %460 = vmatprep.subr.bf16.mxu0 0
    %461 = vmatpush1.bf16.xpose.msra.mxu0 0
    %462 = vmatprep.subr.bf16.mxu0 0
    %463 = vmatpush1.bf16.xpose.msra.mxu0 0
    %464 = vmatprep.subr.bf16.mxu0 0
    %465 = vmatpush1.bf16.xpose.msra.mxu0 0
    %466 = vmatprep.subr.bf16.mxu0 0
    %467 = vmatpush1.bf16.xpose.msra.mxu0 0
    %468 = vmatprep.subr.bf16.mxu0 0
    %469 = vmatpush1.bf16.xpose.msra.mxu0 0
    %470 = vmatprep.subr.bf16.mxu0 0
    %471 = vmatpush1.bf16.xpose.msra.mxu0 0
    %472 = vmatprep.subr.bf16.mxu0 0
    %473 = vmatpush1.bf16.xpose.msra.mxu0 0
    %474 = vmatprep.subr.bf16.mxu0 0
    %475 = vmatpush1.bf16.xpose.msra.mxu0 0
    %476 = vmatprep.subr.bf16.mxu0 0
    %477 = vmatpush1.bf16.xpose.msra.mxu0 0
    %478 = vmatprep.subr.bf16.mxu0 0
    %479 = vmatpush1.bf16.xpose.msra.mxu0 0
    %480 = vmatprep.subr.bf16.mxu0 0
    %481 = vmatpush1.bf16.xpose.msra.mxu0 0
    %482 = vmatprep.subr.bf16.mxu0 0
    %483 = vmatpush1.bf16.xpose.msra.mxu0 0
    %484 = vmatprep.subr.bf16.mxu0 0
    %485 = vmatpush1.bf16.xpose.msra.mxu0 0
    %486 = vmatprep.mubr.bf16.mxu0 0
    %487 = vmatmul.mubr.bf16.gmra.mrb[0].mxu0 %v449
    %v488 = vpop.f32.mrb[0].mxu0
    %v489 = vadd.f32 0.0, %v488
    %v490 = vpop.f32.mrb[0].mxu0
    %v491 = vpop.f32.mrb[0].mxu0
    %v492 = vpop.f32.mrb[0].mxu0
    %493 = vdwg.mxu0
    %v495 = vsel %vm355, %v340, 0
    %v498 = vsel %vm355, %v347, 0
    %500 = vmatprep.subr.bf16.mxu0 0
    %501 = vmatpush1.bf16.xpose.msra.mxu0 %v498
    %502 = vmatprep.subr.bf16.mxu0 0
    %503 = vmatpush1.bf16.xpose.msra.mxu0 0
    %504 = vmatprep.subr.bf16.mxu0 0
    %505 = vmatpush1.bf16.xpose.msra.mxu0 0
    %506 = vmatprep.subr.bf16.mxu0 0
    %507 = vmatpush1.bf16.xpose.msra.mxu0 0
    %508 = vmatprep.subr.bf16.mxu0 0
    %509 = vmatpush1.bf16.xpose.msra.mxu0 0
    %510 = vmatprep.subr.bf16.mxu0 0
    %511 = vmatpush1.bf16.xpose.msra.mxu0 0
    %512 = vmatprep.subr.bf16.mxu0 0
    %513 = vmatpush1.bf16.xpose.msra.mxu0 0
    %514 = vmatprep.subr.bf16.mxu0 0
    %515 = vmatpush1.bf16.xpose.msra.mxu0 0
    %516 = vmatprep.subr.bf16.mxu0 0
    %517 = vmatpush1.bf16.xpose.msra.mxu0 0
    %518 = vmatprep.subr.bf16.mxu0 0
    %519 = vmatpush1.bf16.xpose.msra.mxu0 0
    %520 = vmatprep.subr.bf16.mxu0 0
    %521 = vmatpush1.bf16.xpose.msra.mxu0 0
    %522 = vmatprep.subr.bf16.mxu0 0
    %523 = vmatpush1.bf16.xpose.msra.mxu0 0
    %524 = vmatprep.subr.bf16.mxu0 0
    %525 = vmatpush1.bf16.xpose.msra.mxu0 0
    %526 = vmatprep.subr.bf16.mxu0 0
    %527 = vmatpush1.bf16.xpose.msra.mxu0 0
    %528 = vmatprep.subr.bf16.mxu0 0
    %529 = vmatpush1.bf16.xpose.msra.mxu0 0
    %530 = vmatprep.subr.bf16.mxu0 0
    %531 = vmatpush1.bf16.xpose.msra.mxu0 0
    %532 = vmatprep.mubr.bf16.mxu0 0
    %533 = vmatmul.mubr.bf16.gmra.mrb[0].mxu0 %v495
    %v534 = vpop.f32.mrb[0].mxu0
    %v535 = vadd.f32 0.0, %v534
    %v536 = vpop.f32.mrb[0].mxu0
    %v537 = vpop.f32.mrb[0].mxu0
    %v538 = vpop.f32.mrb[0].mxu0
    %539 = vdwg.mxu0
    %v540 = vld [vmem:[#allocation8] sm:$0xff]
    %vm541 = vcmp.eq.s32.totalorder %v540, 0
    %v542 = vsel %vm541, 1, 0
    %vm543 = vcmp.eq.s32.totalorder %v542, 1
    %v544 = vsel %vm543, -1e+09, %v397
    %v545 = vsel %vm543, -1e+09, %v443
    %v546 = vsel %vm543, -1e+09, %v489
    %v547 = vsel %vm543, -1e+09, %v535
    %v548 = vsel %vm355, %v544, -inf
    %549 = vmax.xlane.f32.xlu0 %v548
    %v550 = vpop.xlane.xlu0 %549
    %v551 = vsel %vm355, %v545, -inf
    %552 = vmax.xlane.f32.xlu0 %v551
    %v553 = vpop.xlane.xlu0 %552
    %v554 = vsel %vm355, %v546, -inf
    %555 = vmax.xlane.f32.xlu0 %v554
    %v556 = vpop.xlane.xlu0 %555
    %v557 = vsel %vm355, %v547, -inf
    %558 = vmax.xlane.f32.xlu0 %v557
    %v559 = vpop.xlane.xlu0 %558
    %v560 = vsub.f32 %v544, %v550
    %v561 = vsub.f32 %v545, %v553
    %v562 = vsub.f32 %v546, %v556
    %v563 = vsub.f32 %v547, %v559
    %v564 = vmul.f32 %v560, 1.442695
    %v565 = vpow.pop %v564
    %v566 = vmul.f32 %v561, 1.442695
    %v567 = vpow.pop %v566
    %v568 = vmul.f32 %v562, 1.442695
    %v569 = vpow.pop %v568
    %v570 = vmul.f32 %v563, 1.442695
    %v571 = vpow.pop %v570
    %v572 = vsel %vm355, %v565, 0.0
    %573 = vadd.xlane.f32.xlu0 %v572
    %v574 = vpop.xlane.xlu0 %573
    %v575 = vsel %vm355, %v567, 0.0
    %576 = vadd.xlane.f32.xlu0 %v575
    %v577 = vpop.xlane.xlu0 %576
    %v578 = vsel %vm355, %v569, 0.0
    %579 = vadd.xlane.f32.xlu0 %v578
    %v580 = vpop.xlane.xlu0 %579
    %v581 = vsel %vm355, %v571, 0.0
    %582 = vadd.xlane.f32.xlu0 %v581
    %v583 = vpop.xlane.xlu0 %582
    %v584 = vrcp.pop %v574
    %v585 = vrcp.pop %v577
    %v586 = vrcp.pop %v580
    %v587 = vrcp.pop %v583
    %v588 = vmul.f32 %v565, %v584
    %v589 = vmul.f32 %v567, %v585
    %v590 = vmul.f32 %v569, %v586
    %v591 = vmul.f32 %v571, %v587
    %v592 = vpack.c.bf16 %v588, %v588
    %v593 = vpack.c.bf16 %v589, %v589
    %v594 = vpack.c.bf16 %v590, %v590
    %v595 = vpack.c.bf16 %v591, %v591
    %v597 = vsel %vm355, %v592, 0
    %vm599 = vcmask 1043456
    %v601 = vsel %vm599, %v333, 0
    %603 = vmatprep.subr.bf16.mxu0 0
    %604 = vmatpush1.bf16.msra.mxu0 %v601
    %605 = vmatprep.subr.bf16.mxu0 0
    %606 = vmatpush1.bf16.msra.mxu0 0
    %607 = vmatprep.subr.bf16.mxu0 0
    %608 = vmatpush1.bf16.msra.mxu0 0
    %609 = vmatprep.subr.bf16.mxu0 0
    %610 = vmatpush1.bf16.msra.mxu0 0
    %611 = vmatprep.subr.bf16.mxu0 0
    %612 = vmatpush1.bf16.msra.mxu0 0
    %613 = vmatprep.subr.bf16.mxu0 0
    %614 = vmatpush1.bf16.msra.mxu0 0
    %615 = vmatprep.subr.bf16.mxu0 0
    %616 = vmatpush1.bf16.msra.mxu0 0
    %617 = vmatprep.subr.bf16.mxu0 0
    %618 = vmatpush1.bf16.msra.mxu0 0
    %619 = vmatprep.subr.bf16.mxu0 0
    %620 = vmatpush1.bf16.msra.mxu0 0
    %621 = vmatprep.subr.bf16.mxu0 0
    %622 = vmatpush1.bf16.msra.mxu0 0
    %623 = vmatprep.subr.bf16.mxu0 0
    %624 = vmatpush1.bf16.msra.mxu0 0
    %625 = vmatprep.subr.bf16.mxu0 0
    %626 = vmatpush1.bf16.msra.mxu0 0
    %627 = vmatprep.subr.bf16.mxu0 0
    %628 = vmatpush1.bf16.msra.mxu0 0
    %629 = vmatprep.subr.bf16.mxu0 0
    %630 = vmatpush1.bf16.msra.mxu0 0
    %631 = vmatprep.subr.bf16.mxu0 0
    %632 = vmatpush1.bf16.msra.mxu0 0
    %633 = vmatprep.subr.bf16.mxu0 0
    %634 = vmatpush1.bf16.msra.mxu0 0
    %635 = vmatprep.mubr.bf16.mxu0 0
    %636 = vmatmul.mubr.bf16.gmra.mrb[0].mxu0 %v597
    %v637 = vpop.f32.mrb[0].mxu0
    %v638 = vadd.f32 0.0, %v637
    %v639 = vpop.f32.mrb[0].mxu0
    %v640 = vpop.f32.mrb[0].mxu0
    %v641 = vpop.f32.mrb[0].mxu0
    %642 = vdwg.mxu0
    %v644 = vsel %vm355, %v593, 0
    %v647 = vsel %vm599, %v350, 0
    %649 = vmatprep.subr.bf16.mxu0 0
    %650 = vmatpush1.bf16.msra.mxu0 %v647
    %651 = vmatprep.subr.bf16.mxu0 0
    %652 = vmatpush1.bf16.msra.mxu0 0
    %653 = vmatprep.subr.bf16.mxu0 0
    %654 = vmatpush1.bf16.msra.mxu0 0
    %655 = vmatprep.subr.bf16.mxu0 0
    %656 = vmatpush1.bf16.msra.mxu0 0
    %657 = vmatprep.subr.bf16.mxu0 0
    %658 = vmatpush1.bf16.msra.mxu0 0
    %659 = vmatprep.subr.bf16.mxu0 0
    %660 = vmatpush1.bf16.msra.mxu0 0
    %661 = vmatprep.subr.bf16.mxu0 0
    %662 = vmatpush1.bf16.msra.mxu0 0
    %663 = vmatprep.subr.bf16.mxu0 0
    %664 = vmatpush1.bf16.msra.mxu0 0
    %665 = vmatprep.subr.bf16.mxu0 0
    %666 = vmatpush1.bf16.msra.mxu0 0
    %667 = vmatprep.subr.bf16.mxu0 0
    %668 = vmatpush1.bf16.msra.mxu0 0
    %669 = vmatprep.subr.bf16.mxu0 0
    %670 = vmatpush1.bf16.msra.mxu0 0
    %671 = vmatprep.subr.bf16.mxu0 0
    %672 = vmatpush1.bf16.msra.mxu0 0
    %673 = vmatprep.subr.bf16.mxu0 0
    %674 = vmatpush1.bf16.msra.mxu0 0
    %675 = vmatprep.subr.bf16.mxu0 0
    %676 = vmatpush1.bf16.msra.mxu0 0
    %677 = vmatprep.subr.bf16.mxu0 0
    %678 = vmatpush1.bf16.msra.mxu0 0
    %679 = vmatprep.subr.bf16.mxu0 0
    %680 = vmatpush1.bf16.msra.mxu0 0
    %681 = vmatprep.mubr.bf16.mxu0 0
    %682 = vmatmul.mubr.bf16.gmra.mrb[0].mxu0 %v644
    %v683 = vpop.f32.mrb[0].mxu0
    %v684 = vadd.f32 0.0, %v683
    %v685 = vpop.f32.mrb[0].mxu0
    %v686 = vpop.f32.mrb[0].mxu0
    %v687 = vpop.f32.mrb[0].mxu0
    %688 = vdwg.mxu0
    %v690 = vsel %vm355, %v594, 0
    %v693 = vsel %vm599, %v352, 0
    %695 = vmatprep.subr.bf16.mxu0 0
    %696 = vmatpush1.bf16.msra.mxu0 %v693
    %697 = vmatprep.subr.bf16.mxu0 0
    %698 = vmatpush1.bf16.msra.mxu0 0
    %699 = vmatprep.subr.bf16.mxu0 0
    %700 = vmatpush1.bf16.msra.mxu0 0
    %701 = vmatprep.subr.bf16.mxu0 0
    %702 = vmatpush1.bf16.msra.mxu0 0
    %703 = vmatprep.subr.bf16.mxu0 0
    %704 = vmatpush1.bf16.msra.mxu0 0
    %705 = vmatprep.subr.bf16.mxu0 0
    %706 = vmatpush1.bf16.msra.mxu0 0
    %707 = vmatprep.subr.bf16.mxu0 0
    %708 = vmatpush1.bf16.msra.mxu0 0
    %709 = vmatprep.subr.bf16.mxu0 0
    %710 = vmatpush1.bf16.msra.mxu0 0
    %711 = vmatprep.subr.bf16.mxu0 0
    %712 = vmatpush1.bf16.msra.mxu0 0
    %713 = vmatprep.subr.bf16.mxu0 0
    %714 = vmatpush1.bf16.msra.mxu0 0
    %715 = vmatprep.subr.bf16.mxu0 0
    %716 = vmatpush1.bf16.msra.mxu0 0
    %717 = vmatprep.subr.bf16.mxu0 0
    %718 = vmatpush1.bf16.msra.mxu0 0
    %719 = vmatprep.subr.bf16.mxu0 0
    %720 = vmatpush1.bf16.msra.mxu0 0
    %721 = vmatprep.subr.bf16.mxu0 0
    %722 = vmatpush1.bf16.msra.mxu0 0
    %723 = vmatprep.subr.bf16.mxu0 0
    %724 = vmatpush1.bf16.msra.mxu0 0
    %725 = vmatprep.subr.bf16.mxu0 0
    %726 = vmatpush1.bf16.msra.mxu0 0
    %727 = vmatprep.mubr.bf16.mxu0 0
    %728 = vmatmul.mubr.bf16.gmra.mrb[0].mxu0 %v690
    %v729 = vpop.f32.mrb[0].mxu0
    %v730 = vadd.f32 0.0, %v729
    %v731 = vpop.f32.mrb[0].mxu0
    %v732 = vpop.f32.mrb[0].mxu0
    %v733 = vpop.f32.mrb[0].mxu0
    %734 = vdwg.mxu0
    %v736 = vsel %vm355, %v595, 0
    %v739 = vsel %vm599, %v354, 0
    %741 = vmatprep.subr.bf16.mxu0 0
    %742 = vmatpush1.bf16.msra.mxu0 %v739
    %743 = vmatprep.subr.bf16.mxu0 0
    %744 = vmatpush1.bf16.msra.mxu0 0
    %745 = vmatprep.subr.bf16.mxu0 0
    %746 = vmatpush1.bf16.msra.mxu0 0
    %747 = vmatprep.subr.bf16.mxu0 0
    %748 = vmatpush1.bf16.msra.mxu0 0
    %749 = vmatprep.subr.bf16.mxu0 0
    %750 = vmatpush1.bf16.msra.mxu0 0
    %751 = vmatprep.subr.bf16.mxu0 0
    %752 = vmatpush1.bf16.msra.mxu0 0
    %753 = vmatprep.subr.bf16.mxu0 0
    %754 = vmatpush1.bf16.msra.mxu0 0
    %755 = vmatprep.subr.bf16.mxu0 0
    %756 = vmatpush1.bf16.msra.mxu0 0
    %757 = vmatprep.subr.bf16.mxu0 0
    %758 = vmatpush1.bf16.msra.mxu0 0
    %759 = vmatprep.subr.bf16.mxu0 0
    %760 = vmatpush1.bf16.msra.mxu0 0
    %761 = vmatprep.subr.bf16.mxu0 0
    %762 = vmatpush1.bf16.msra.mxu0 0
    %763 = vmatprep.subr.bf16.mxu0 0
    %764 = vmatpush1.bf16.msra.mxu0 0
    %765 = vmatprep.subr.bf16.mxu0 0
    %766 = vmatpush1.bf16.msra.mxu0 0
    %767 = vmatprep.subr.bf16.mxu0 0
    %768 = vmatpush1.bf16.msra.mxu0 0
    %769 = vmatprep.subr.bf16.mxu0 0
    %770 = vmatpush1.bf16.msra.mxu0 0
    %771 = vmatprep.subr.bf16.mxu0 0
    %772 = vmatpush1.bf16.msra.mxu0 0
    %773 = vmatprep.mubr.bf16.mxu0 0
    %774 = vmatmul.mubr.bf16.gmra.mrb[0].mxu0 %v736
    %v775 = vpop.f32.mrb[0].mxu0
    %v776 = vadd.f32 0.0, %v775
    %v777 = vpop.f32.mrb[0].mxu0
    %v778 = vpop.f32.mrb[0].mxu0
    %v779 = vpop.f32.mrb[0].mxu0
    %780 = vdwg.mxu0
    %782 = vrot.lane.b32.xlu0 %v684, 8
    %v783 = vpop.permute.xlu0 %782
    %786 = vrot.lane.b32.xlu0 %v730, 16
    %v787 = vpop.permute.xlu0 %786
    %790 = vrot.lane.b32.xlu0 %v776, 24
    %v791 = vpop.permute.xlu0 %790
    %v793 = vsel %vm355, %v638, %v783
    %vm794 = vcmask 130048
    %v795 = vsel %vm794, %v793, %v787
    %vm796 = vcmask 195584
    %v797 = vsel %vm796, %v795, %v791
    %v798 = vpack.c.bf16 %v797, %v797
    %v799 = vld [vmem:[%s10] sm:$0xf]
    %v800 = vld [vmem:[%s10 + $0x4] sm:$0xf]
    %v801 = vld [vmem:[%s10 + $0x8] sm:$0xf]
    %v802 = vld [vmem:[%s10 + $0xc] sm:$0xf]
    %v803 = vld [vmem:[%s11] sm:$0x1]
    %v805 = vlaneseq
    %v806 = vshrl.u32 %v805, 7
    %v807 = vsub.s32 0, %v806
    %v808 = vrot.slane %v803, %v807
    %v814 = vunpack.c.l.b16 %v799
    %v815 = vunpack.c.l.b16 %v800
    %v816 = vunpack.c.l.b16 %v801
    %v817 = vunpack.c.l.b16 %v802
    %v818 = vpack.c.b16 %v815, %v814
    %v819 = vpack.c.b16 %v817, %v816
    %v823 = vsel %vm152, %v798, 0
    %825 = vmatprep.subr.bf16.mxu0 0
    %826 = vmatpush1.bf16.msra.mxu0 %v818
    %827 = vmatprep.subr.bf16.mxu0 0
    %828 = vmatpush1.bf16.msra.mxu0 %v819
    %829 = vmatprep.subr.bf16.mxu0 0
    %830 = vmatpush1.bf16.msra.mxu0 0
    %831 = vmatprep.subr.bf16.mxu0 0
    %832 = vmatpush1.bf16.msra.mxu0 0
    %833 = vmatprep.subr.bf16.mxu0 0
    %834 = vmatpush1.bf16.msra.mxu0 0
    %835 = vmatprep.subr.bf16.mxu0 0
    %836 = vmatpush1.bf16.msra.mxu0 0
    %837 = vmatprep.subr.bf16.mxu0 0
    %838 = vmatpush1.bf16.msra.mxu0 0
    %839 = vmatprep.subr.bf16.mxu0 0
    %840 = vmatpush1.bf16.msra.mxu0 0
    %841 = vmatprep.subr.bf16.mxu0 0
    %842 = vmatpush1.bf16.msra.mxu0 0
    %843 = vmatprep.subr.bf16.mxu0 0
    %844 = vmatpush1.bf16.msra.mxu0 0
    %845 = vmatprep.subr.bf16.mxu0 0
    %846 = vmatpush1.bf16.msra.mxu0 0
    %847 = vmatprep.subr.bf16.mxu0 0
    %848 = vmatpush1.bf16.msra.mxu0 0
    %849 = vmatprep.subr.bf16.mxu0 0
    %850 = vmatpush1.bf16.msra.mxu0 0
    %851 = vmatprep.subr.bf16.mxu0 0
    %852 = vmatpush1.bf16.msra.mxu0 0
    %853 = vmatprep.subr.bf16.mxu0 0
    %854 = vmatpush1.bf16.msra.mxu0 0
    %855 = vmatprep.subr.bf16.mxu0 0
    %856 = vmatpush1.bf16.msra.mxu0 0
    %857 = vmatprep.mubr.bf16.mxu0 0
    %858 = vmatmul.mubr.bf16.gmra.mrb[0].mxu0 %v823
    %v859 = vpop.f32.mrb[0].mxu0
    %v860 = vadd.f32 %v808, %v859
    %v861 = vpop.f32.mrb[0].mxu0
    %v862 = vpop.f32.mrb[0].mxu0
    %v863 = vpop.f32.mrb[0].mxu0
    %864 = vdwg.mxu0
    %865 = vst [vmem:[#allocation14] sm:$0xff] %v860
    // Predicated region
    $region78: #{tpu_custom_call.1} parent=1 // pred_check
      _
    $region79: #{tpu_custom_call.1} parent=1 // pred_check_branch
      %867 = sbr.rel (0) target = $region81
    $region80: #{tpu_custom_call.1} parent=1 // pred_region
      %s869 = ssub.s32 128, 128
      %870 = vsyncadd [#allocation4], %s869
      %s872 = sshll.u32 [#allocation14], 4
      %s873 = int_to_ptr.vmem [resolvable:$true] %s872
      %875 = dma.vmem_to_hbm [thread:$0]  %s873, 128, %s12, [#allocation4]
    $region81: #{tpu_custom_call.1} parent=1 // pred_fallthru
      _
    // Predicated region
    $region82: #{tpu_custom_call.1} parent=1 // pred_check
      _
    $region83: #{tpu_custom_call.1} parent=1 // pred_check_branch
      %877 = sbr.rel (0) target = $region85
    $region84: #{tpu_custom_call.1} parent=1 // pred_region
      %878 = dma.done [#allocation4], 128
    $region85: #{tpu_custom_call.1} parent=1 // pred_fallthru
      _
    %879 = vsyncpa [#allocation3], 1
    %880 = vsyncpa [#allocation6], 1
    %881 = vsyncpa [#allocation9], 1
    %882 = vsyncpa [#allocation12], 1
    %883 = vsyncpa [#allocation4], 1

</llo_original>
